<compile_context>
chip_gen: v6e
topology: v6e:2x2x1
jax: 0.10.0
libtpu: 0.0.40
codegen_flags: <defaults>
</compile_context>

<pallas_src>
import numpy as np
import jax
import jax.numpy as jnp
from jax.experimental import pallas as pl
from jax.experimental.pallas import tpu as pltpu


_LANES = 128
_TARGET_TILE_BYTES = 2 * 1024 * 1024    # ~2 MiB per input tile -> >=4 steps above ~8 MiB
_LIVE_TILE_BUDGET = 16 * 1024 * 1024    # (k+1) tiles x 2 pipeline buffers must fit here
_VMEM_LIMIT_BYTES = 32 * 1024 * 1024    # safe on v5e/v6e (128 MiB) and v7x (64 MiB) VMEM


# ----------------------------------------------------------------------------
# Pallas kernel
# ----------------------------------------------------------------------------

def _make_combine_swish_kernel(k):
    """Kernel with k separate VMEM input refs + an SMEM weight ref."""

    def kernel(w_ref, *refs):
        # w_ref: SMEM (k,) float32, already relu-normalized in the wrapper.
        # refs[:k]: (bm, lane) input tiles; refs[k]: output tile (same dtype as inputs).
        x_refs = refs[:k]
        o_ref = refs[k]
        acc = w_ref[0] * x_refs[0][...].astype(jnp.float32)
        for i in range(1, k):                       # k is tiny; unrolled Python loop
            acc = acc + w_ref[i] * x_refs[i][...].astype(jnp.float32)
        # swish = x * sigmoid(x); exp goes to the EUP slot.  (pl.reciprocal(approx=True)
        # would shave a little VALU work but adds ~1e-4 rel error; keep exact sigmoid.)
        out = acc * jax.nn.sigmoid(acc)
        o_ref[...] = out.astype(o_ref.dtype)

    return kernel


# ----------------------------------------------------------------------------
# Layout / tiling policy
# ----------------------------------------------------------------------------

def _choose_layout(total, sub):
    """Pad the flat element count to a whole number of vregs and pick a lane-dense
    (rows, lane) 2-D view: lane multiple of 128, rows multiple of the sublane pack."""
    vreg_elems = sub * _LANES
    padded = ((total + vreg_elems - 1) // vreg_elems) * vreg_elems
    lane = _LANES                                   # always valid: padded/128 % sub == 0
    for cand in (2048, 1024, 512, 256, 128):        # prefer the widest lane-dense view
        if padded % cand == 0 and (padded // cand) % sub == 0:
            lane = cand
            break
    return padded, lane, padded // lane


def _pick_row_block(rows, lane, itemsize, k, sub, target_tile_bytes):
    """Largest sublane-aligned divisor of rows whose tile stays within the per-tile
    target AND the total live-tile VMEM budget ((k+1) arrays x 2 pipeline buffers)."""
    per_row = lane * itemsize
    cap_bytes = min(target_tile_bytes, _LIVE_TILE_BUDGET // ((k + 1) * 2))
    bm_cap = max(sub, (cap_bytes // per_row) // sub * sub)
    bm_cap = min(bm_cap, rows)
    for bm in range(bm_cap, sub - 1, -sub):
        if rows % bm == 0:
            return bm
    return sub                                      # rows is a multiple of sub by construction


# ----------------------------------------------------------------------------
# Wrapper
# ----------------------------------------------------------------------------

def layer_combine_swish(inputs, raw_weights, *, target_tile_bytes=_TARGET_TILE_BYTES,
                        xla_fallback_below_bytes=0):
    """JAX/Pallas equivalent of LayerCombineModule.forward(inputs)."""
    k = len(inputs)
    shape = inputs[0].shape
    dtype = inputs[0].dtype
    total = int(np.prod(shape))
    itemsize = jnp.dtype(dtype).itemsize
    sub = max(8, 32 // itemsize)                    # sublane pack: f32->8, bf16->16, int8->32

    # Relu-normalized combine weights: tiny scalar glue, computed once (f32).
    w = jnp.maximum(jnp.asarray(raw_weights, jnp.float32).reshape(-1), 0.0)
    w = w / (jnp.sum(w) + 1e-4)                     # matches weights / (weights.sum() + 0.0001)

    # Optional: tiny BiFPN nodes are dominated by pallas_call launch overhead; let XLA fuse.
    if total * itemsize < xla_fallback_below_bytes:
        out = w[0] * inputs[0].astype(jnp.float32)
        for i in range(1, k):
            out = out + w[i] * inputs[i].astype(jnp.float32)
        return (out * jax.nn.sigmoid(out)).astype(dtype)

    padded, lane, rows = _choose_layout(total, sub)
    bm = _pick_row_block(rows, lane, itemsize, k, sub, target_tile_bytes)
    grid = (rows // bm,)

    xs2d = []
    for x in inputs:
        xf = x.astype(dtype).reshape(-1)
        if padded != total:
            xf = jnp.pad(xf, (0, padded - total))   # pad once; sliced off after the call
        xs2d.append(xf.reshape(rows, lane))

    kernel = _make_combine_swish_kernel(k)
    out = pl.pallas_call(
        kernel,
        out_shape=jax.ShapeDtypeStruct((rows, lane), dtype),
        grid=grid,
        in_specs=[pl.BlockSpec(memory_space=pltpu.MemorySpace.SMEM)]
        + [pl.BlockSpec((bm, lane), lambda i: (i, 0)) for _ in range(k)],
        out_specs=pl.BlockSpec((bm, lane), lambda i: (i, 0)),
        compiler_params=pltpu.CompilerParams(
            dimension_semantics=("parallel",),      # shards grid steps across v7x TCs
            vmem_limit_bytes=_VMEM_LIMIT_BYTES,
        ),
        cost_estimate=pl.CostEstimate(
            flops=padded * (2 * k + 1),
            transcendentals=padded,
            bytes_accessed=(k + 1) * padded * itemsize,
        ),
    )(w, *xs2d)

    out = out.reshape(-1)
    if padded != total:
        out = out[:total]
    return out.reshape(shape)


# ----------------------------------------------------------------------------
# Pure-JAX reference (for correctness check)
# ----------------------------------------------------------------------------

def layer_combine_swish_ref(inputs, raw_weights):
    w = jnp.maximum(jnp.asarray(raw_weights, jnp.float32).reshape(-1), 0.0)
    w = w / (jnp.sum(w) + 1e-4)
    out = w[0] * inputs[0].astype(jnp.float32)
    for i in range(1, len(inputs)):
        out = out + w[i] * inputs[i].astype(jnp.float32)
    return out * jax.nn.sigmoid(out)


# ----------------------------------------------------------------------------
# main
# ----------------------------------------------------------------------------

if __name__ == "__main__":
    key = jax.random.PRNGKey(0)
    k1, k2, k3, k4, k5, kw, k6, k7 = jax.random.split(key, 8)

    # Case 1: default LayerCombineModule(num_input=2), NCHW feature maps (2, 64, 16, 16),
    # weights initialized like the PyTorch module: torch.ones(2).view(1,1,1,1,-1).
    a = jax.random.normal(k1, (2, 64, 16, 16), jnp.float32)
    b = jax.random.normal(k2, (2, 64, 16, 16), jnp.float32)
    w2 = jnp.ones((1, 1, 1, 1, 2), jnp.float32)
    out1 = layer_combine_swish([a, b], w2)
    jax.block_until_ready(out1)
    ref1 = layer_combine_swish_ref([a, b], w2)
    np.testing.assert_allclose(np.asarray(out1), np.asarray(ref1), rtol=1e-5, atol=1e-5)

    # Case 2: num_input=3, negative weights (relu path), spatial size NOT a multiple of
    # 128 -> exercises the pad-to-vreg + slice-back lane-dense path.
    c = jax.random.normal(k3, (2, 48, 10, 10), jnp.float32)
    d = jax.random.normal(k4, (2, 48, 10, 10), jnp.float32)
    e = jax.random.normal(k5, (2, 48, 10, 10), jnp.float32)
    w3 = jax.random.normal(kw, (3,), jnp.float32)
    out2 = layer_combine_swish([c, d, e], w3)
    jax.block_until_ready(out2)
    ref2 = layer_combine_swish_ref([c, d, e], w3)
    np.testing.assert_allclose(np.asarray(out2), np.asarray(ref2), rtol=1e-5, atol=1e-5)

    # Case 3: force the multi-step pipelined grid (small tile cap -> grid of 8 steps)
    # to validate the tiled/parallel path that large feature maps take.
    f = jax.random.normal(k6, (2, 64, 32, 32), jnp.float32)
    g = jax.random.normal(k7, (2, 64, 32, 32), jnp.float32)
    out3 = layer_combine_swish([f, g], w2, target_tile_bytes=64 * 1024)
    jax.block_until_ready(out3)
    ref3 = layer_combine_swish_ref([f, g], w2)
    np.testing.assert_allclose(np.asarray(out3), np.asarray(ref3), rtol=1e-5, atol=1e-5)

    # Case 4: bf16 inputs/outputs (halved HBM traffic), f32 math inside the kernel.
    a16, b16 = a.astype(jnp.bfloat16), b.astype(jnp.bfloat16)
    out4 = layer_combine_swish([a16, b16], w2)
    jax.block_until_ready(out4)
    assert out4.dtype == jnp.bfloat16
    ref4 = layer_combine_swish_ref([a16, b16], w2)
    np.testing.assert_allclose(np.asarray(out4, dtype=np.float32), np.asarray(ref4),
                               rtol=2e-2, atol=2e-2)

    assert out1.shape == a.shape and out2.shape == c.shape and out3.shape == f.shape
    assert bool(jnp.all(jnp.isfinite(out1))) and bool(jnp.all(jnp.isfinite(out2)))
    assert bool(jnp.all(jnp.isfinite(out3)))
    print("KERNEL_OK")
</pallas_src>

<mosaic_0001>
module attributes {stable_mosaic.version = 11 : i64} {
  func.func @kernel(%arg0: i32, %arg1: memref<2xf32, #tpu.memory_space<smem>>, %arg2: memref<16x2048xf32, #tpu.memory_space<vmem>>, %arg3: memref<16x2048xf32, #tpu.memory_space<vmem>>, %arg4: memref<16x2048xf32, #tpu.memory_space<vmem>>) attributes {dimension_semantics = [#tpu.dimension_semantics<parallel>], iteration_bounds = array<i64: 1>, scalar_prefetch = 0 : i64, scratch_operands = 0 : i64, tpu.core_type = #tpu.core_type<tc>, window_params = [{transform_indices = @transform_0, window_bounds = array<i64: 2>}, {transform_indices = @transform_1, window_bounds = array<i64: 16, 2048>}, {transform_indices = @transform_2, window_bounds = array<i64: 16, 2048>}, {transform_indices = @transform_3, window_bounds = array<i64: 16, 2048>}]} {
    %c0 = arith.constant 0 : index
    %0 = memref.load %arg1[%c0] : memref<2xf32, #tpu.memory_space<smem>>
    %c0_0 = arith.constant 0 : index
    %c0_1 = arith.constant 0 : index
    %1 = vector.load %arg2[%c0_0, %c0_1] : memref<16x2048xf32, #tpu.memory_space<vmem>>, vector<16x2048xf32>
    %2 = vector.broadcast %0 : f32 to vector<16x2048xf32>
    %3 = arith.mulf %2, %1 : vector<16x2048xf32>
    %c1 = arith.constant 1 : index
    %4 = memref.load %arg1[%c1] : memref<2xf32, #tpu.memory_space<smem>>
    %c0_2 = arith.constant 0 : index
    %c0_3 = arith.constant 0 : index
    %5 = vector.load %arg3[%c0_2, %c0_3] : memref<16x2048xf32, #tpu.memory_space<vmem>>, vector<16x2048xf32>
    %6 = vector.broadcast %4 : f32 to vector<16x2048xf32>
    %7 = arith.mulf %6, %5 : vector<16x2048xf32>
    %8 = arith.addf %3, %7 : vector<16x2048xf32>
    %9 = arith.negf %8 : vector<16x2048xf32>
    %10 = math.exp %9 : vector<16x2048xf32>
    %cst = arith.constant 1.000000e+00 : f32
    %11 = vector.broadcast %cst : f32 to vector<16x2048xf32>
    %12 = arith.addf %11, %10 : vector<16x2048xf32>
    %13 = arith.divf %11, %12 : vector<16x2048xf32>
    %14 = arith.mulf %8, %13 : vector<16x2048xf32>
    %c0_4 = arith.constant 0 : index
    %c0_5 = arith.constant 0 : index
    %15 = vector.load %arg4[%c0_4, %c0_5] : memref<16x2048xf32, #tpu.memory_space<vmem>>, vector<16x2048xf32>
    tpu.vector_store %arg4[%c0_4, %c0_5], %14 {strides = array<i32>} : memref<16x2048xf32, #tpu.memory_space<vmem>>, vector<16x2048xf32>,
    return
  }
  func.func @transform_0(%arg0: i32) -> i32 {
    %c0_i32 = arith.constant 0 : i32
    %c0_i32_0 = arith.constant 0 : i32
    return %c0_i32 : i32
  }
  func.func @transform_1(%arg0: i32) -> (i32, i32) {
    %c0_i32 = arith.constant 0 : i32
    %c0_i32_0 = arith.constant 0 : i32
    return %arg0, %c0_i32 : i32, i32
  }
  func.func @transform_2(%arg0: i32) -> (i32, i32) {
    %c0_i32 = arith.constant 0 : i32
    %c0_i32_0 = arith.constant 0 : i32
    return %arg0, %c0_i32 : i32, i32
  }
  func.func @transform_3(%arg0: i32) -> (i32, i32) {
    %c0_i32 = arith.constant 0 : i32
    %c0_i32_0 = arith.constant 0 : i32
    return %arg0, %c0_i32 : i32, i32
  }
}

</mosaic_0001>

<llo_original>
// kernel: tpu_custom_call.1
$region0: #{tpu_custom_call.1}
  #allocation0 [shape = 'u32[]', space=smem, size = 0x4, offset = 0x4, fixed_abs, tag = 'smem constant byte address 0x4 - core index']
  #allocation1 [shape = 'u32[144,128]{1,0:T(1,128)}', space=vmem, size = 0x12000, scoped, tag = 'internal scratch']
  %s0 = inlined_call_operand.hbm [shape: f32[2], index: 0, kind: input, shape index: {}]
  %s1 = inlined_call_operand.hbm [shape: f32[16,2048], index: 1, kind: input, shape index: {}]
  %s2 = inlined_call_operand.hbm [shape: f32[16,2048], index: 2, kind: input, shape index: {}]
  %s3 = inlined_call_operand.hbm [shape: f32[16,2048], index: 3, kind: output, shape index: {}]
  %s4 = sld [smem:[#allocation0]]
  $region34: #{tpu_custom_call.1} parent=0
    _
  %s6 = ssub.s32 1, %s4
  %s7 = scalar_select 0, %s6, %s4
  $region1: #{tpu_custom_call.1} parent=0
    #allocation2 [shape = 'u8[512]{0}', space=smem, size = 0x200, scoped, tag = 'input window, operand 0, single buffered']
    #allocation3 [shape = 's32[1]{0}', space=sflag, size = 0x4, scoped, tag = 'scoped memory for tpu_custom_call.1']
    #allocation4 [shape = 's32[1]{0}', space=sflag, size = 0x4, scoped, tag = 'scoped memory for tpu_custom_call.1']
    #allocation5 [shape = 's32[1]{0}', space=sflag, size = 0x4, scoped, tag = 'scoped memory for tpu_custom_call.1']
    #allocation6 [shape = 'u8[131072]{0}', space=vmem, size = 0x20000, scoped, tag = 'input window, operand 1, single buffered']
    #allocation7 [shape = 'u8[131072]{0}', space=vmem, size = 0x20000, scoped, tag = 'input window, operand 2, single buffered']
    #allocation8 [shape = 's32[1]{0}', space=sflag, size = 0x4, scoped, tag = 'scoped memory for tpu_custom_call.1']
    #allocation9 [shape = 'u8[131072]{0}', space=vmem, size = 0x20000, scoped, tag = 'output window, operand 0, single buffered']
    %8 = vsyncpa [#allocation5], 0
    %9 = vsyncpa [#allocation3], 0
    %10 = vsyncpa [#allocation8], 0
    %11 = vsyncpa [#allocation4], 0
    // Predicated region
    $region2: #{tpu_custom_call.1} parent=1 // pred_check
      _
    $region3: #{tpu_custom_call.1} parent=1 // pred_check_branch
      %13 = sbr.rel (0) target = $region5
    $region4: #{tpu_custom_call.1} parent=1 // pred_region
      %s15 = ssub.s32 16, 16
      %16 = vsyncadd [#allocation5], %s15
      %19 = dma.hbm_to_smem %s0, 16, [#allocation2], [#allocation5]
    $region5: #{tpu_custom_call.1} parent=1 // pred_fallthru
      _
    // Predicated region
    $region6: #{tpu_custom_call.1} parent=1 // pred_check
      _
    $region7: #{tpu_custom_call.1} parent=1 // pred_check_branch
      %21 = sbr.rel (0) target = $region9
    $region8: #{tpu_custom_call.1} parent=1 // pred_region
      %s23 = ssub.s32 4096, 4096
      %24 = vsyncadd [#allocation3], %s23
      %s25 = sshll.u32 [#allocation6], 4
      %s26 = int_to_ptr.vmem [resolvable:$true] %s25
      %31 = dma.hbm_to_vmem [thread:$0]  %s1, 4096, %s26, [#allocation3], 2048, 2048, 128
    $region9: #{tpu_custom_call.1} parent=1 // pred_fallthru
      _
    // Predicated region
    $region10: #{tpu_custom_call.1} parent=1 // pred_check
      _
    $region11: #{tpu_custom_call.1} parent=1 // pred_check_branch
      %33 = sbr.rel (0) target = $region13
    $region12: #{tpu_custom_call.1} parent=1 // pred_region
      %s35 = ssub.s32 4096, 4096
      %36 = vsyncadd [#allocation8], %s35
      %s37 = sshll.u32 [#allocation7], 4
      %s38 = int_to_ptr.vmem [resolvable:$true] %s37
      %43 = dma.hbm_to_vmem [thread:$0]  %s2, 4096, %s38, [#allocation8], 2048, 2048, 128
    $region13: #{tpu_custom_call.1} parent=1 // pred_fallthru
      _
    // Predicated region
    $region14: #{tpu_custom_call.1} parent=1 // pred_check
      _
    $region15: #{tpu_custom_call.1} parent=1 // pred_check_branch
      %45 = sbr.rel (0) target = $region17
    $region16: #{tpu_custom_call.1} parent=1 // pred_region
      %46 = dma.done [#allocation5], 16
    $region17: #{tpu_custom_call.1} parent=1 // pred_fallthru
      _
    // Predicated region
    $region18: #{tpu_custom_call.1} parent=1 // pred_check
      _
    $region19: #{tpu_custom_call.1} parent=1 // pred_check_branch
      %48 = sbr.rel (0) target = $region21
    $region20: #{tpu_custom_call.1} parent=1 // pred_region
      %49 = dma.done [#allocation3], 4096
    $region21: #{tpu_custom_call.1} parent=1 // pred_fallthru
      _
    // Predicated region
    $region22: #{tpu_custom_call.1} parent=1 // pred_check
      _
    $region23: #{tpu_custom_call.1} parent=1 // pred_check_branch
      %51 = sbr.rel (0) target = $region25
    $region24: #{tpu_custom_call.1} parent=1 // pred_region
      %52 = dma.done [#allocation8], 4096
    $region25: #{tpu_custom_call.1} parent=1 // pred_fallthru
      _
    %53 = sfence
    %s54 = sld [smem:[#allocation2]]
    %v55 = vld [vmem:[#allocation6] sm:$0xff]
    %v56 = vld [vmem:[#allocation6 + $0x8] sm:$0xff]
    %v57 = vld [vmem:[#allocation6 + $0x10] sm:$0xff]
    %v58 = vld [vmem:[#allocation6 + $0x18] sm:$0xff]
    %v59 = vld [vmem:[#allocation6 + $0x20] sm:$0xff]
    %v60 = vld [vmem:[#allocation6 + $0x28] sm:$0xff]
    %v61 = vld [vmem:[#allocation6 + $0x30] sm:$0xff]
    %v62 = vld [vmem:[#allocation6 + $0x38] sm:$0xff]
    %v63 = vld [vmem:[#allocation6 + $0x40] sm:$0xff]
    %v64 = vld [vmem:[#allocation6 + $0x48] sm:$0xff]
    %v65 = vld [vmem:[#allocation6 + $0x50] sm:$0xff]
    %v66 = vld [vmem:[#allocation6 + $0x58] sm:$0xff]
    %v67 = vld [vmem:[#allocation6 + $0x60] sm:$0xff]
    %v68 = vld [vmem:[#allocation6 + $0x68] sm:$0xff]
    %v69 = vld [vmem:[#allocation6 + $0x70] sm:$0xff]
    %v70 = vld [vmem:[#allocation6 + $0x78] sm:$0xff]
    %v71 = vld [vmem:[#allocation6 + $0x80] sm:$0xff]
    %v72 = vld [vmem:[#allocation6 + $0x88] sm:$0xff]
    %v73 = vld [vmem:[#allocation6 + $0x90] sm:$0xff]
    %v74 = vld [vmem:[#allocation6 + $0x98] sm:$0xff]
    %v75 = vld [vmem:[#allocation6 + $0xa0] sm:$0xff]
    %v76 = vld [vmem:[#allocation6 + $0xa8] sm:$0xff]
    %v77 = vld [vmem:[#allocation6 + $0xb0] sm:$0xff]
    %v78 = vld [vmem:[#allocation6 + $0xb8] sm:$0xff]
    %v79 = vld [vmem:[#allocation6 + $0xc0] sm:$0xff]
    %v80 = vld [vmem:[#allocation6 + $0xc8] sm:$0xff]
    %v81 = vld [vmem:[#allocation6 + $0xd0] sm:$0xff]
    %v82 = vld [vmem:[#allocation6 + $0xd8] sm:$0xff]
    %v83 = vld [vmem:[#allocation6 + $0xe0] sm:$0xff]
    %v84 = vld [vmem:[#allocation6 + $0xe8] sm:$0xff]
    %v85 = vld [vmem:[#allocation6 + $0xf0] sm:$0xff]
    %v86 = vld [vmem:[#allocation6 + $0xf8] sm:$0xff]
    %v87 = vstv %s54
    %v88 = vmul.f32 %v87, %v55
    %v89 = vmul.f32 %v87, %v56
    %v90 = vmul.f32 %v87, %v57
    %v91 = vmul.f32 %v87, %v58
    %v92 = vmul.f32 %v87, %v59
    %v93 = vmul.f32 %v87, %v60
    %v94 = vmul.f32 %v87, %v61
    %v95 = vmul.f32 %v87, %v62
    %v96 = vmul.f32 %v87, %v63
    %v97 = vmul.f32 %v87, %v64
    %v98 = vmul.f32 %v87, %v65
    %v99 = vmul.f32 %v87, %v66
    %v100 = vmul.f32 %v87, %v67
    %v101 = vmul.f32 %v87, %v68
    %v102 = vmul.f32 %v87, %v69
    %v103 = vmul.f32 %v87, %v70
    %v104 = vmul.f32 %v87, %v71
    %v105 = vmul.f32 %v87, %v72
    %v106 = vmul.f32 %v87, %v73
    %v107 = vmul.f32 %v87, %v74
    %v108 = vmul.f32 %v87, %v75
    %v109 = vmul.f32 %v87, %v76
    %v110 = vmul.f32 %v87, %v77
    %v111 = vmul.f32 %v87, %v78
    %v112 = vmul.f32 %v87, %v79
    %v113 = vmul.f32 %v87, %v80
    %v114 = vmul.f32 %v87, %v81
    %v115 = vmul.f32 %v87, %v82
    %v116 = vmul.f32 %v87, %v83
    %v117 = vmul.f32 %v87, %v84
    %v118 = vmul.f32 %v87, %v85
    %v119 = vmul.f32 %v87, %v86
    %s120 = sld [smem:[#allocation2 + $0x1]]
    %v121 = vld [vmem:[#allocation7] sm:$0xff]
    %v122 = vld [vmem:[#allocation7 + $0x8] sm:$0xff]
    %v123 = vld [vmem:[#allocation7 + $0x10] sm:$0xff]
    %v124 = vld [vmem:[#allocation7 + $0x18] sm:$0xff]
    %v125 = vld [vmem:[#allocation7 + $0x20] sm:$0xff]
    %v126 = vld [vmem:[#allocation7 + $0x28] sm:$0xff]
    %v127 = vld [vmem:[#allocation7 + $0x30] sm:$0xff]
    %v128 = vld [vmem:[#allocation7 + $0x38] sm:$0xff]
    %v129 = vld [vmem:[#allocation7 + $0x40] sm:$0xff]
    %v130 = vld [vmem:[#allocation7 + $0x48] sm:$0xff]
    %v131 = vld [vmem:[#allocation7 + $0x50] sm:$0xff]
    %v132 = vld [vmem:[#allocation7 + $0x58] sm:$0xff]
    %v133 = vld [vmem:[#allocation7 + $0x60] sm:$0xff]
    %v134 = vld [vmem:[#allocation7 + $0x68] sm:$0xff]
    %v135 = vld [vmem:[#allocation7 + $0x70] sm:$0xff]
    %v136 = vld [vmem:[#allocation7 + $0x78] sm:$0xff]
    %v137 = vld [vmem:[#allocation7 + $0x80] sm:$0xff]
    %v138 = vld [vmem:[#allocation7 + $0x88] sm:$0xff]
    %v139 = vld [vmem:[#allocation7 + $0x90] sm:$0xff]
    %v140 = vld [vmem:[#allocation7 + $0x98] sm:$0xff]
    %v141 = vld [vmem:[#allocation7 + $0xa0] sm:$0xff]
    %v142 = vld [vmem:[#allocation7 + $0xa8] sm:$0xff]
    %v143 = vld [vmem:[#allocation7 + $0xb0] sm:$0xff]
    %v144 = vld [vmem:[#allocation7 + $0xb8] sm:$0xff]
    %v145 = vld [vmem:[#allocation7 + $0xc0] sm:$0xff]
    %v146 = vld [vmem:[#allocation7 + $0xc8] sm:$0xff]
    %v147 = vld [vmem:[#allocation7 + $0xd0] sm:$0xff]
    %v148 = vld [vmem:[#allocation7 + $0xd8] sm:$0xff]
    %v149 = vld [vmem:[#allocation7 + $0xe0] sm:$0xff]
    %v150 = vld [vmem:[#allocation7 + $0xe8] sm:$0xff]
    %v151 = vld [vmem:[#allocation7 + $0xf0] sm:$0xff]
    %v152 = vld [vmem:[#allocation7 + $0xf8] sm:$0xff]
    %v153 = vstv %s120
    %v154 = vmul.f32 %v153, %v121
    %v155 = vmul.f32 %v153, %v122
    %v156 = vmul.f32 %v153, %v123
    %v157 = vmul.f32 %v153, %v124
    %v158 = vmul.f32 %v153, %v125
    %v159 = vmul.f32 %v153, %v126
    %v160 = vmul.f32 %v153, %v127
    %v161 = vmul.f32 %v153, %v128
    %v162 = vmul.f32 %v153, %v129
    %v163 = vmul.f32 %v153, %v130
    %v164 = vmul.f32 %v153, %v131
    %v165 = vmul.f32 %v153, %v132
    %v166 = vmul.f32 %v153, %v133
    %v167 = vmul.f32 %v153, %v134
    %v168 = vmul.f32 %v153, %v135
    %v169 = vmul.f32 %v153, %v136
    %v170 = vmul.f32 %v153, %v137
    %v171 = vmul.f32 %v153, %v138
    %v172 = vmul.f32 %v153, %v139
    %v173 = vmul.f32 %v153, %v140
    %v174 = vmul.f32 %v153, %v141
    %v175 = vmul.f32 %v153, %v142
    %v176 = vmul.f32 %v153, %v143
    %v177 = vmul.f32 %v153, %v144
    %v178 = vmul.f32 %v153, %v145
    %v179 = vmul.f32 %v153, %v146
    %v180 = vmul.f32 %v153, %v147
    %v181 = vmul.f32 %v153, %v148
    %v182 = vmul.f32 %v153, %v149
    %v183 = vmul.f32 %v153, %v150
    %v184 = vmul.f32 %v153, %v151
    %v185 = vmul.f32 %v153, %v152
    %v186 = vadd.f32 %v88, %v154
    %v187 = vadd.f32 %v89, %v155
    %v188 = vadd.f32 %v90, %v156
    %v189 = vadd.f32 %v91, %v157
    %v190 = vadd.f32 %v92, %v158
    %v191 = vadd.f32 %v93, %v159
    %v192 = vadd.f32 %v94, %v160
    %v193 = vadd.f32 %v95, %v161
    %v194 = vadd.f32 %v96, %v162
    %v195 = vadd.f32 %v97, %v163
    %v196 = vadd.f32 %v98, %v164
    %v197 = vadd.f32 %v99, %v165
    %v198 = vadd.f32 %v100, %v166
    %v199 = vadd.f32 %v101, %v167
    %v200 = vadd.f32 %v102, %v168
    %v201 = vadd.f32 %v103, %v169
    %v202 = vadd.f32 %v104, %v170
    %v203 = vadd.f32 %v105, %v171
    %v204 = vadd.f32 %v106, %v172
    %v205 = vadd.f32 %v107, %v173
    %v206 = vadd.f32 %v108, %v174
    %v207 = vadd.f32 %v109, %v175
    %v208 = vadd.f32 %v110, %v176
    %v209 = vadd.f32 %v111, %v177
    %v210 = vadd.f32 %v112, %v178
    %v211 = vadd.f32 %v113, %v179
    %v212 = vadd.f32 %v114, %v180
    %v213 = vadd.f32 %v115, %v181
    %v214 = vadd.f32 %v116, %v182
    %v215 = vadd.f32 %v117, %v183
    %v216 = vadd.f32 %v118, %v184
    %v217 = vadd.f32 %v119, %v185
    %v218 = vxor.u32 %v186, 2147483648
    %v219 = vxor.u32 %v187, 2147483648
    %v220 = vxor.u32 %v188, 2147483648
    %v221 = vxor.u32 %v189, 2147483648
    %v222 = vxor.u32 %v190, 2147483648
    %v223 = vxor.u32 %v191, 2147483648
    %v224 = vxor.u32 %v192, 2147483648
    %v225 = vxor.u32 %v193, 2147483648
    %v226 = vxor.u32 %v194, 2147483648
    %v227 = vxor.u32 %v195, 2147483648
    %v228 = vxor.u32 %v196, 2147483648
    %v229 = vxor.u32 %v197, 2147483648
    %v230 = vxor.u32 %v198, 2147483648
    %v231 = vxor.u32 %v199, 2147483648
    %v232 = vxor.u32 %v200, 2147483648
    %v233 = vxor.u32 %v201, 2147483648
    %v234 = vxor.u32 %v202, 2147483648
    %v235 = vxor.u32 %v203, 2147483648
    %v236 = vxor.u32 %v204, 2147483648
    %v237 = vxor.u32 %v205, 2147483648
    %v238 = vxor.u32 %v206, 2147483648
    %v239 = vxor.u32 %v207, 2147483648
    %v240 = vxor.u32 %v208, 2147483648
    %v241 = vxor.u32 %v209, 2147483648
    %v242 = vxor.u32 %v210, 2147483648
    %v243 = vxor.u32 %v211, 2147483648
    %v244 = vxor.u32 %v212, 2147483648
    %v245 = vxor.u32 %v213, 2147483648
    %v246 = vxor.u32 %v214, 2147483648
    %v247 = vxor.u32 %v215, 2147483648
    %v248 = vxor.u32 %v216, 2147483648
    %v249 = vxor.u32 %v217, 2147483648
    %v250 = vmul.f32 %v218, 1.442695
    %v251 = vpow.pop %v250
    %v252 = vmul.f32 %v219, 1.442695
    %v253 = vpow.pop %v252
    %v254 = vmul.f32 %v220, 1.442695
    %v255 = vpow.pop %v254
    %v256 = vmul.f32 %v221, 1.442695
    %v257 = vpow.pop %v256
    %v258 = vmul.f32 %v222, 1.442695
    %v259 = vpow.pop %v258
    %v260 = vmul.f32 %v223, 1.442695
    %v261 = vpow.pop %v260
    %v262 = vmul.f32 %v224, 1.442695
    %v263 = vpow.pop %v262
    %v264 = vmul.f32 %v225, 1.442695
    %v265 = vpow.pop %v264
    %v266 = vmul.f32 %v226, 1.442695
    %v267 = vpow.pop %v266
    %v268 = vmul.f32 %v227, 1.442695
    %v269 = vpow.pop %v268
    %v270 = vmul.f32 %v228, 1.442695
    %v271 = vpow.pop %v270
    %v272 = vmul.f32 %v229, 1.442695
    %v273 = vpow.pop %v272
    %v274 = vmul.f32 %v230, 1.442695
    %v275 = vpow.pop %v274
    %v276 = vmul.f32 %v231, 1.442695
    %v277 = vpow.pop %v276
    %v278 = vmul.f32 %v232, 1.442695
    %v279 = vpow.pop %v278
    %v280 = vmul.f32 %v233, 1.442695
    %v281 = vpow.pop %v280
    %v282 = vmul.f32 %v234, 1.442695
    %v283 = vpow.pop %v282
    %v284 = vmul.f32 %v235, 1.442695
    %v285 = vpow.pop %v284
    %v286 = vmul.f32 %v236, 1.442695
    %v287 = vpow.pop %v286
    %v288 = vmul.f32 %v237, 1.442695
    %v289 = vpow.pop %v288
    %v290 = vmul.f32 %v238, 1.442695
    %v291 = vpow.pop %v290
    %v292 = vmul.f32 %v239, 1.442695
    %v293 = vpow.pop %v292
    %v294 = vmul.f32 %v240, 1.442695
    %v295 = vpow.pop %v294
    %v296 = vmul.f32 %v241, 1.442695
    %v297 = vpow.pop %v296
    %v298 = vmul.f32 %v242, 1.442695
    %v299 = vpow.pop %v298
    %v300 = vmul.f32 %v243, 1.442695
    %v301 = vpow.pop %v300
    %v302 = vmul.f32 %v244, 1.442695
    %v303 = vpow.pop %v302
    %v304 = vmul.f32 %v245, 1.442695
    %v305 = vpow.pop %v304
    %v306 = vmul.f32 %v246, 1.442695
    %v307 = vpow.pop %v306
    %v308 = vmul.f32 %v247, 1.442695
    %v309 = vpow.pop %v308
    %v310 = vmul.f32 %v248, 1.442695
    %v311 = vpow.pop %v310
    %v312 = vmul.f32 %v249, 1.442695
    %v313 = vpow.pop %v312
    %v314 = vadd.f32 %v251, 1.0
    %v315 = vadd.f32 %v253, 1.0
    %v316 = vadd.f32 %v255, 1.0
    %v317 = vadd.f32 %v257, 1.0
    %v318 = vadd.f32 %v259, 1.0
    %v319 = vadd.f32 %v261, 1.0
    %v320 = vadd.f32 %v263, 1.0
    %v321 = vadd.f32 %v265, 1.0
    %v322 = vadd.f32 %v267, 1.0
    %v323 = vadd.f32 %v269, 1.0
    %v324 = vadd.f32 %v271, 1.0
    %v325 = vadd.f32 %v273, 1.0
    %v326 = vadd.f32 %v275, 1.0
    %v327 = vadd.f32 %v277, 1.0
    %v328 = vadd.f32 %v279, 1.0
    %v329 = vadd.f32 %v281, 1.0
    %v330 = vadd.f32 %v283, 1.0
    %v331 = vadd.f32 %v285, 1.0
    %v332 = vadd.f32 %v287, 1.0
    %v333 = vadd.f32 %v289, 1.0
    %v334 = vadd.f32 %v291, 1.0
    %v335 = vadd.f32 %v293, 1.0
    %v336 = vadd.f32 %v295, 1.0
    %v337 = vadd.f32 %v297, 1.0
    %v338 = vadd.f32 %v299, 1.0
    %v339 = vadd.f32 %v301, 1.0
    %v340 = vadd.f32 %v303, 1.0
    %v341 = vadd.f32 %v305, 1.0
    %v342 = vadd.f32 %v307, 1.0
    %v343 = vadd.f32 %v309, 1.0
    %v344 = vadd.f32 %v311, 1.0
    %v345 = vadd.f32 %v313, 1.0
    %v346 = vrcp.pop %v314
    %v347 = vmul.f32 1.0, %v346
    %v348 = vrcp.pop %v315
    %v349 = vmul.f32 1.0, %v348
    %v350 = vrcp.pop %v316
    %v351 = vmul.f32 1.0, %v350
    %v352 = vrcp.pop %v317
    %v353 = vmul.f32 1.0, %v352
    %v354 = vrcp.pop %v318
    %v355 = vmul.f32 1.0, %v354
    %v356 = vrcp.pop %v319
    %v357 = vmul.f32 1.0, %v356
    %v358 = vrcp.pop %v320
    %v359 = vmul.f32 1.0, %v358
    %v360 = vrcp.pop %v321
    %v361 = vmul.f32 1.0, %v360
    %v362 = vrcp.pop %v322
    %v363 = vmul.f32 1.0, %v362
    %v364 = vrcp.pop %v323
    %v365 = vmul.f32 1.0, %v364
    %v366 = vrcp.pop %v324
    %v367 = vmul.f32 1.0, %v366
    %v368 = vrcp.pop %v325
    %v369 = vmul.f32 1.0, %v368
    %v370 = vrcp.pop %v326
    %v371 = vmul.f32 1.0, %v370
    %v372 = vrcp.pop %v327
    %v373 = vmul.f32 1.0, %v372
    %v374 = vrcp.pop %v328
    %v375 = vmul.f32 1.0, %v374
    %v376 = vrcp.pop %v329
    %v377 = vmul.f32 1.0, %v376
    %v378 = vrcp.pop %v330
    %v379 = vmul.f32 1.0, %v378
    %v380 = vrcp.pop %v331
    %v381 = vmul.f32 1.0, %v380
    %v382 = vrcp.pop %v332
    %v383 = vmul.f32 1.0, %v382
    %v384 = vrcp.pop %v333
    %v385 = vmul.f32 1.0, %v384
    %v386 = vrcp.pop %v334
    %v387 = vmul.f32 1.0, %v386
    %v388 = vrcp.pop %v335
    %v389 = vmul.f32 1.0, %v388
    %v390 = vrcp.pop %v336
    %v391 = vmul.f32 1.0, %v390
    %v392 = vrcp.pop %v337
    %v393 = vmul.f32 1.0, %v392
    %v394 = vrcp.pop %v338
    %v395 = vmul.f32 1.0, %v394
    %v396 = vrcp.pop %v339
    %v397 = vmul.f32 1.0, %v396
    %v398 = vrcp.pop %v340
    %v399 = vmul.f32 1.0, %v398
    %v400 = vrcp.pop %v341
    %v401 = vmul.f32 1.0, %v400
    %v402 = vrcp.pop %v342
    %v403 = vmul.f32 1.0, %v402
    %v404 = vrcp.pop %v343
    %v405 = vmul.f32 1.0, %v404
    %v406 = vrcp.pop %v344
    %v407 = vmul.f32 1.0, %v406
    %v408 = vrcp.pop %v345
    %v409 = vmul.f32 1.0, %v408
    %v410 = vmul.f32 %v186, %v347
    %v411 = vmul.f32 %v187, %v349
    %v412 = vmul.f32 %v188, %v351
    %v413 = vmul.f32 %v189, %v353
    %v414 = vmul.f32 %v190, %v355
    %v415 = vmul.f32 %v191, %v357
    %v416 = vmul.f32 %v192, %v359
    %v417 = vmul.f32 %v193, %v361
    %v418 = vmul.f32 %v194, %v363
    %v419 = vmul.f32 %v195, %v365
    %v420 = vmul.f32 %v196, %v367
    %v421 = vmul.f32 %v197, %v369
    %v422 = vmul.f32 %v198, %v371
    %v423 = vmul.f32 %v199, %v373
    %v424 = vmul.f32 %v200, %v375
    %v425 = vmul.f32 %v201, %v377
    %v426 = vmul.f32 %v202, %v379
    %v427 = vmul.f32 %v203, %v381
    %v428 = vmul.f32 %v204, %v383
    %v429 = vmul.f32 %v205, %v385
    %v430 = vmul.f32 %v206, %v387
    %v431 = vmul.f32 %v207, %v389
    %v432 = vmul.f32 %v208, %v391
    %v433 = vmul.f32 %v209, %v393
    %v434 = vmul.f32 %v210, %v395
    %v435 = vmul.f32 %v211, %v397
    %v436 = vmul.f32 %v212, %v399
    %v437 = vmul.f32 %v213, %v401
    %v438 = vmul.f32 %v214, %v403
    %v439 = vmul.f32 %v215, %v405
    %v440 = vmul.f32 %v216, %v407
    %v441 = vmul.f32 %v217, %v409
    %442 = vst [vmem:[#allocation9] sm:$0xff] %v410
    %443 = vst [vmem:[#allocation9 + $0x8] sm:$0xff] %v411
    %444 = vst [vmem:[#allocation9 + $0x10] sm:$0xff] %v412
    %445 = vst [vmem:[#allocation9 + $0x18] sm:$0xff] %v413
    %446 = vst [vmem:[#allocation9 + $0x20] sm:$0xff] %v414
    %447 = vst [vmem:[#allocation9 + $0x28] sm:$0xff] %v415
    %448 = vst [vmem:[#allocation9 + $0x30] sm:$0xff] %v416
    %449 = vst [vmem:[#allocation9 + $0x38] sm:$0xff] %v417
    %450 = vst [vmem:[#allocation9 + $0x40] sm:$0xff] %v418
    %451 = vst [vmem:[#allocation9 + $0x48] sm:$0xff] %v419
    %452 = vst [vmem:[#allocation9 + $0x50] sm:$0xff] %v420
    %453 = vst [vmem:[#allocation9 + $0x58] sm:$0xff] %v421
    %454 = vst [vmem:[#allocation9 + $0x60] sm:$0xff] %v422
    %455 = vst [vmem:[#allocation9 + $0x68] sm:$0xff] %v423
    %456 = vst [vmem:[#allocation9 + $0x70] sm:$0xff] %v424
    %457 = vst [vmem:[#allocation9 + $0x78] sm:$0xff] %v425
    %458 = vst [vmem:[#allocation9 + $0x80] sm:$0xff] %v426
    %459 = vst [vmem:[#allocation9 + $0x88] sm:$0xff] %v427
    %460 = vst [vmem:[#allocation9 + $0x90] sm:$0xff] %v428
    %461 = vst [vmem:[#allocation9 + $0x98] sm:$0xff] %v429
    %462 = vst [vmem:[#allocation9 + $0xa0] sm:$0xff] %v430
    %463 = vst [vmem:[#allocation9 + $0xa8] sm:$0xff] %v431
    %464 = vst [vmem:[#allocation9 + $0xb0] sm:$0xff] %v432
    %465 = vst [vmem:[#allocation9 + $0xb8] sm:$0xff] %v433
    %466 = vst [vmem:[#allocation9 + $0xc0] sm:$0xff] %v434
    %467 = vst [vmem:[#allocation9 + $0xc8] sm:$0xff] %v435
    %468 = vst [vmem:[#allocation9 + $0xd0] sm:$0xff] %v436
    %469 = vst [vmem:[#allocation9 + $0xd8] sm:$0xff] %v437
    %470 = vst [vmem:[#allocation9 + $0xe0] sm:$0xff] %v438
    %471 = vst [vmem:[#allocation9 + $0xe8] sm:$0xff] %v439
    %472 = vst [vmem:[#allocation9 + $0xf0] sm:$0xff] %v440
    %473 = vst [vmem:[#allocation9 + $0xf8] sm:$0xff] %v441
    // Predicated region
    $region26: #{tpu_custom_call.1} parent=1 // pred_check
      _
    $region27: #{tpu_custom_call.1} parent=1 // pred_check_branch
      %475 = sbr.rel (0) target = $region29
    $region28: #{tpu_custom_call.1} parent=1 // pred_region
      %s477 = ssub.s32 4096, 4096
      %478 = vsyncadd [#allocation4], %s477
      %s479 = sshll.u32 [#allocation9], 4
      %s480 = int_to_ptr.vmem [resolvable:$true] %s479
      %485 = dma.vmem_to_hbm [thread:$0]  %s480, 4096, %s3, [#allocation4], 2048, 2048, 128
    $region29: #{tpu_custom_call.1} parent=1 // pred_fallthru
      _
    // Predicated region
    $region30: #{tpu_custom_call.1} parent=1 // pred_check
      _
    $region31: #{tpu_custom_call.1} parent=1 // pred_check_branch
      %487 = sbr.rel (0) target = $region33
    $region32: #{tpu_custom_call.1} parent=1 // pred_region
      %488 = dma.done [#allocation4], 4096
    $region33: #{tpu_custom_call.1} parent=1 // pred_fallthru
      _
    %489 = vsyncpa [#allocation3], 1
    %490 = vsyncpa [#allocation8], 1
    %491 = vsyncpa [#allocation4], 1
    %492 = vsyncpa [#allocation5], 1

</llo_original>
